<compile_context>
chip_gen: v7x
topology: tpu7x:2x2x1
jax: 0.10.0
libtpu: 0.0.40
codegen_flags: <defaults>
</compile_context>

<pallas_src>
import functools

import jax
import jax.numpy as jnp
from jax.experimental import pallas as pl
from jax.experimental.pallas import tpu as pltpu


_F32 = 4
# f32 cast of x, shifted, exp(shifted), iota/one-hot, two where-selected (C, tl)
# products -> ~6 full-tile f32 temporaries live in the body at peak.
_TEMPS_PER_CLASS = 6


def _vmem_capacity_bytes():
    try:
        cap = int(getattr(pltpu.get_tpu_info(), "vmem_capacity_bytes"))
        if cap > 0:
            return cap
    except Exception:
        pass
    return 64 * 1024 * 1024          # conservative fallback (v7x per-core VMEM)


def _plan_3d(hw, c, x_bytes, tl_req):
    """Lane-tile + vmem_limit for the (N, C, HW) layout (classes on sublanes)."""
    cap = _vmem_capacity_bytes()
    # Per-lane VMEM bytes: 2x double-buffered logits + 2x targets tiles,
    # ~6 f32 (C, tl) in-body temporaries, f32 accumulator + output lane.
    per_lane = c * (2 * x_bytes + _TEMPS_PER_CLASS * _F32) + 2 * 4 + 2 * _F32
    if tl_req is None:
        tl_hbm = ((3 << 20) // 2) // max(c * x_bytes, 1)   # ~1.5 MiB logits / step
        tl_vmem = max(int(cap * 0.25) // per_lane, 1)
        tl = min(tl_hbm, tl_vmem)
    else:
        tl = int(tl_req)
    tl = max(128, tl)
    if hw <= tl:
        tl = hw                                   # single tile == full array dim
    else:
        tl = max(128, (tl // 128) * 128)          # lane-aligned tile
    vmem_limit = per_lane * tl + (8 << 20)        # headroom for compiler scratch
    vmem_limit = int(min(max(vmem_limit, 16 << 20), int(cap * 0.9)))
    return tl, vmem_limit


def _plan_rows(m, c, x_bytes, tm_req):
    """Row-tile + vmem_limit for the 2-D (M, C) layout (classes on lanes)."""
    cap = _vmem_capacity_bytes()
    per_row = c * (2 * x_bytes + _TEMPS_PER_CLASS * _F32) + 2 * 4 + 2 * _F32
    if tm_req is None:
        tm_hbm = ((3 << 20) // 2) // max(c * x_bytes, 1)
        tm_vmem = max(int(cap * 0.25) // per_row, 1)
        tm = min(tm_hbm, tm_vmem)
    else:
        tm = int(tm_req)
    tm = max(8, (tm // 8) * 8)
    if m <= tm:
        tm = m
    vmem_limit = per_row * tm + (8 << 20)
    vmem_limit = int(min(max(vmem_limit, 16 << 20), int(cap * 0.9)))
    return tm, vmem_limit


def _apply_gamma(logpt_a, pt, gamma):
    """loss = -(1 - pt)**gamma * (alpha-scaled logpt), static-gamma specialized."""
    if gamma == 0.0:
        return -logpt_a
    one_m_pt = 1.0 - pt
    g = float(gamma)
    if g.is_integer() and 1.0 <= g <= 8.0:
        focal = one_m_pt
        for _ in range(int(g) - 1):
            focal = focal * one_m_pt
    else:
        # Rounding can push pt slightly above 1 -> exp(g*log(neg)) = NaN; clamp.
        focal = jnp.maximum(one_m_pt, 0.0) ** g
    return -focal * logpt_a


# --------------------------------------------------------------------------
# 3-D path: NCHW -> (N, C, HW) free reshape; classes on sublanes, pixels lanes.
# --------------------------------------------------------------------------
def _focal_loss_kernel(x_ref, t_ref, alpha_ref, out_ref, *,
                       gamma, hw, tl, num_j, num_jp, need_mask, use_mxu):
    p = pl.program_id(1)                 # pixel-tile split (parallel, v7x 2-TC)
    j = pl.program_id(2)                 # pixel-tile index within split (reduction)

    @pl.when(j == 0)
    def _():
        out_ref[...] = jnp.zeros_like(out_ref)

    x = x_ref[0].astype(jnp.float32)     # (C, tl): classes on sublanes
    t = t_ref[0].astype(jnp.int32)       # (1, tl)
    C = x.shape[0]

    # log-softmax over the class (sublane) axis, independently per pixel lane.
    m = jnp.max(x, axis=0, keepdims=True)                 # (1, tl)
    shifted = x - m                                       # (C, tl)
    ex = jnp.exp(shifted)                                 # (C, tl)

    # One-hot gather via boolean selects (no f32 one-hot multiplies).
    onehot = jax.lax.broadcasted_iota(jnp.int32, (C, tl), 0) == t   # (C, tl) bool

    def csum(mat):
        # Sum over the class (sublane) axis -> (1, tl).  For large C, route the
        # reduction through the otherwise-idle MXU instead of the XLU.
        if use_mxu:
            ones = jnp.ones((1, C), jnp.float32)
            return jnp.dot(ones, mat, preferred_element_type=jnp.float32)
        return jnp.sum(mat, axis=0, keepdims=True)

    lse = jnp.log(csum(ex))                                          # (1, tl)
    logpt = csum(jnp.where(onehot, shifted, 0.0)) - lse              # (1, tl)
    pt = jnp.exp(logpt)
    at = csum(jnp.where(onehot, alpha_ref[...].astype(jnp.float32), 0.0))
    loss = _apply_gamma(logpt * at, pt, gamma)                       # (1, tl)

    if need_mask:
        # Only the final global pixel tile is ragged; iota/compare/select run
        # there only (static need_mask, dynamic tile index via pl.when).
        is_last = (p * num_jp + j) == (num_j - 1)

        @pl.when(is_last)
        def _():
            col = (num_j - 1) * tl + jax.lax.broadcasted_iota(jnp.int32, (1, tl), 1)
            out_ref[...] += jnp.where(col < hw, loss, 0.0)[None]

        @pl.when(jnp.logical_not(is_last))
        def _():
            out_ref[...] += loss[None]
    else:
        out_ref[...] += loss[None]


def _focal_loss_3d(x3, t3, alpha_vec, *, gamma, tl_req):
    N, C, HW = x3.shape
    tl, vmem_limit = _plan_3d(HW, C, x3.dtype.itemsize, tl_req)
    num_j = pl.cdiv(HW, tl)
    # Split the pixel-tile axis across two parallel grid slots when it divides
    # evenly (keeps both v7x TensorCores busy even when N is 1-2).
    # TODO(synk): odd num_j falls back to a single split (no phantom tiles).
    P = 2 if (num_j >= 2 and num_j % 2 == 0) else 1
    num_jp = num_j // P
    need_mask = (HW % tl) != 0
    use_mxu = C >= 128

    kernel = functools.partial(
        _focal_loss_kernel, gamma=float(gamma), hw=HW, tl=tl,
        num_j=num_j, num_jp=num_jp, need_mask=need_mask, use_mxu=use_mxu)

    def x_map(n, p, j):
        return (n, 0, p * num_jp + j)

    def t_map(n, p, j):
        return (n, 0, p * num_jp + j)

    def a_map(n, p, j):
        return (0, 0)

    def o_map(n, p, j):
        return (n * P + p, 0, 0)

    partials = pl.pallas_call(
        kernel,
        out_shape=jax.ShapeDtypeStruct((N * P, 1, tl), jnp.float32),
        grid_spec=pltpu.PrefetchScalarGridSpec(
            num_scalar_prefetch=0,
            grid=(N, P, num_jp),
            in_specs=[
                # Logits and targets are DMA'd in their native dtypes.
                # (If a trace shows exposed DMA on v6e, pipeline_mode=
                #  pl.Buffered(3) on the logits spec is the next lever.)
                pl.BlockSpec((1, C, tl), x_map),
                pl.BlockSpec((1, 1, tl), t_map),
                pl.BlockSpec((C, 1), a_map),
            ],
            out_specs=pl.BlockSpec((1, 1, tl), o_map),
        ),
        compiler_params=pltpu.CompilerParams(
            dimension_semantics=("parallel", "parallel", "arbitrary"),
            vmem_limit_bytes=vmem_limit,
        ),
    )(x3, t3, alpha_vec)
    return jnp.sum(partials)


# --------------------------------------------------------------------------
# 2-D path: (M, C) rows consumed directly as (tm, C) blocks — classes on lanes.
# No wrapper transpose, so no second HBM copy of the logits.
# --------------------------------------------------------------------------
def _focal_loss_rows_kernel(x_ref, t_ref, alpha_ref, out_ref, *,
                            gamma, m_total, tm, need_mask):
    i = pl.program_id(0)
    x = x_ref[...].astype(jnp.float32)        # (tm, C): classes on lanes
    t = t_ref[...].astype(jnp.int32)          # (tm, 1)
    C = x.shape[1]

    mx = jnp.max(x, axis=1, keepdims=True)
    shifted = x - mx
    lse = jnp.log(jnp.sum(jnp.exp(shifted), axis=1, keepdims=True))  # (tm, 1)

    onehot = jax.lax.broadcasted_iota(jnp.int32, (tm, C), 1) == t    # (tm, C) bool
    logpt = jnp.sum(jnp.where(onehot, shifted, 0.0),
                    axis=1, keepdims=True) - lse                     # (tm, 1)
    pt = jnp.exp(logpt)
    at = jnp.sum(jnp.where(onehot, alpha_ref[...].astype(jnp.float32), 0.0),
                 axis=1, keepdims=True)
    loss = _apply_gamma(logpt * at, pt, gamma)                       # (tm, 1)

    if need_mask:
        is_last = i == pl.num_programs(0) - 1

        @pl.when(is_last)
        def _():
            row = i * tm + jax.lax.broadcasted_iota(jnp.int32, (tm, 1), 0)
            out_ref[...] = jnp.where(row < m_total, loss, 0.0)

        @pl.when(jnp.logical_not(is_last))
        def _():
            out_ref[...] = loss
    else:
        out_ref[...] = loss


def _focal_loss_rows(x2, t2, alpha_row, *, gamma, tm_req):
    M, C = x2.shape
    tm, vmem_limit = _plan_rows(M, C, x2.dtype.itemsize, tm_req)
    num_i = pl.cdiv(M, tm)
    need_mask = (M % tm) != 0

    kernel = functools.partial(_focal_loss_rows_kernel, gamma=float(gamma),
                               m_total=M, tm=tm, need_mask=need_mask)

    per_row = pl.pallas_call(
        kernel,
        out_shape=jax.ShapeDtypeStruct((M, 1), jnp.float32),
        grid_spec=pltpu.PrefetchScalarGridSpec(
            num_scalar_prefetch=0,
            grid=(num_i,),
            in_specs=[
                pl.BlockSpec((tm, C), lambda i: (i, 0)),
                pl.BlockSpec((tm, 1), lambda i: (i, 0)),
                pl.BlockSpec((1, C), lambda i: (0, 0)),
            ],
            out_specs=pl.BlockSpec((tm, 1), lambda i: (i, 0)),
        ),
        compiler_params=pltpu.CompilerParams(
            dimension_semantics=("parallel",),
            vmem_limit_bytes=vmem_limit,
        ),
    )(x2, t2, alpha_row)
    return jnp.sum(per_row)


# --------------------------------------------------------------------------
# Public wrapper mirroring FocalLoss.forward(input, target).
# --------------------------------------------------------------------------
def _alpha_array(alpha, C):
    if alpha is None:
        return jnp.ones((C,), jnp.float32)
    if isinstance(alpha, (float, int)):
        a = jnp.array([float(alpha), 1.0 - float(alpha)], jnp.float32)
    else:
        a = jnp.asarray(alpha, jnp.float32)
    assert a.shape[0] == C, "alpha length must match number of classes"
    return a


def focal_loss(x, target, *, gamma=0.0, alpha=None, size_average=True, tl=None):
    """Pallas implementation of FocalLoss.forward(input, target)."""
    if not jnp.issubdtype(target.dtype, jnp.integer):
        target = target.astype(jnp.int32)

    if x.ndim > 2:
        # NCHW (or NC...) -> (N, C, HW): a free reshape; the view/transpose/view
        # of the PyTorch module is folded into the kernel's (C, tl) block layout.
        N, C = x.shape[0], x.shape[1]
        x3 = x.reshape(N, C, -1)
        HW = x3.shape[2]
        M = N * HW
        t3 = target.reshape(N, 1, HW)
        alpha_vec = _alpha_array(alpha, C).reshape(C, 1)
        total = _focal_loss_3d(x3, t3, alpha_vec, gamma=gamma, tl_req=tl)
    else:
        # 2-D (M, C) logits: consumed directly as (tm, C) blocks (classes on
        # lanes) — no wrapper transpose / extra HBM copy.
        M, C = x.shape
        t2 = target.reshape(M, 1)
        alpha_row = _alpha_array(alpha, C).reshape(1, C)
        total = _focal_loss_rows(x, t2, alpha_row, gamma=gamma, tm_req=tl)

    if size_average:
        return total / jnp.float32(M)
    return total


def _focal_loss_ref(x, target, *, gamma=0.0, alpha=None, size_average=True):
    """Pure-JAX reference mirroring the PyTorch module."""
    if x.ndim > 2:
        N, C = x.shape[0], x.shape[1]
        x = jnp.transpose(x.reshape(N, C, -1), (0, 2, 1)).reshape(-1, C)
    t = target.reshape(-1).astype(jnp.int32)
    logp = jax.nn.log_softmax(x.astype(jnp.float32), axis=1)
    logpt = jnp.take_along_axis(logp, t[:, None], axis=1)[:, 0]
    pt = jnp.exp(logpt)
    if alpha is not None:
        if isinstance(alpha, (float, int)):
            alpha_arr = jnp.array([alpha, 1.0 - alpha], jnp.float32)
        else:
            alpha_arr = jnp.asarray(alpha, jnp.float32)
        logpt = logpt * alpha_arr[t]
    loss = -1.0 * (1.0 - pt) ** gamma * logpt
    return loss.mean() if size_average else loss.sum()


if __name__ == "__main__":
    key = jax.random.PRNGKey(0)
    kx, kt, kx2, kt2, kx3, kt3 = jax.random.split(key, 6)

    # Case 1: NCHW logits + per-class alpha list, gamma=2, mean reduction.
    N, C, H, W = 2, 4, 16, 16
    x = jax.random.normal(kx, (N, C, H, W), dtype=jnp.float32)
    target = jax.random.randint(kt, (N, H, W), 0, C, dtype=jnp.int32)
    gamma, alpha = 2.0, [0.1, 0.2, 0.3, 0.4]

    out = jax.block_until_ready(
        focal_loss(x, target, gamma=gamma, alpha=alpha, size_average=True))
    ref = _focal_loss_ref(x, target, gamma=gamma, alpha=alpha, size_average=True)
    assert jnp.allclose(out, ref, rtol=1e-5, atol=1e-6), (out, ref)

    # Case 2: alpha=None, gamma=0 (plain NLL), sum reduction (static branches).
    out2 = jax.block_until_ready(
        focal_loss(x, target, gamma=0.0, alpha=None, size_average=False))
    ref2 = _focal_loss_ref(x, target, gamma=0.0, alpha=None, size_average=False)
    assert jnp.allclose(out2, ref2, rtol=1e-5, atol=1e-5), (out2, ref2)

    # Case 3: ragged H*W with an explicit small tile -> exercises the 2-way
    # pixel-tile split (grid (N, 2, 1)) and the pl.when-guarded lane mask.
    Hr = Wr = 13
    xr = jax.random.normal(kx2, (N, C, Hr, Wr), dtype=jnp.float32)
    tr = jax.random.randint(kt2, (N, Hr, Wr), 0, C, dtype=jnp.int32)
    out3 = jax.block_until_ready(
        focal_loss(xr, tr, gamma=gamma, alpha=alpha, size_average=True, tl=128))
    ref3 = _focal_loss_ref(xr, tr, gamma=gamma, alpha=alpha, size_average=True)
    assert jnp.allclose(out3, ref3, rtol=1e-5, atol=1e-6), (out3, ref3)

    # Case 4: 2-D (M, C) logits path (no wrapper transpose), ragged row tiles.
    M2 = 40
    x2 = jax.random.normal(kx3, (M2, C), dtype=jnp.float32)
    t2 = jax.random.randint(kt3, (M2,), 0, C, dtype=jnp.int32)
    out4 = jax.block_until_ready(
        focal_loss(x2, t2, gamma=gamma, alpha=alpha, size_average=True, tl=16))
    ref4 = _focal_loss_ref(x2, t2, gamma=gamma, alpha=alpha, size_average=True)
    assert jnp.allclose(out4, ref4, rtol=1e-5, atol=1e-6), (out4, ref4)

    print("KERNEL_OK")
</pallas_src>

<mosaic_0001>
module attributes {stable_mosaic.version = 11 : i64} {
  func.func @_focal_loss_kernel(%arg0: i32, %arg1: i32, %arg2: i32, %arg3: memref<1x4x256xf32, #tpu.memory_space<vmem>>, %arg4: memref<1x1x256xi32, #tpu.memory_space<vmem>>, %arg5: memref<4x1xf32, #tpu.memory_space<vmem>>, %arg6: memref<1x1x256xf32, #tpu.memory_space<vmem>>) attributes {dimension_semantics = [#tpu.dimension_semantics<parallel>, #tpu.dimension_semantics<parallel>, #tpu.dimension_semantics<arbitrary>], iteration_bounds = array<i64: 2, 1, 1>, scalar_prefetch = 0 : i64, scratch_operands = 0 : i64, tpu.core_type = #tpu.core_type<tc>, window_params = [{transform_indices = @transform_0, window_bounds = array<i64: 1, 4, 256>}, {transform_indices = @transform_1, window_bounds = array<i64: 1, 1, 256>}, {pipeline_mode = #tpu.pipeline_mode<synchronous>, transform_indices = @transform_2, window_bounds = array<i64: 4, 1>}, {transform_indices = @transform_3, window_bounds = array<i64: 1, 1, 256>}]} {
    %c0_i32 = arith.constant 0 : i32
    %0 = arith.cmpi eq, %arg2, %c0_i32 : i32
    %1 = arith.extui %0 : i1 to i32
    %c0_i32_0 = arith.constant 0 : i32
    %2 = arith.cmpi ne, %1, %c0_i32_0 : i32
    scf.if %2 {
      %cst_21 = arith.constant 0.000000e+00 : f32
      %42 = vector.broadcast %cst_21 : f32 to vector<1x1x256xf32>
      %c0_22 = arith.constant 0 : index
      %c0_23 = arith.constant 0 : index
      %c0_24 = arith.constant 0 : index
      %43 = vector.load %arg6[%c0_22, %c0_23, %c0_24] : memref<1x1x256xf32, #tpu.memory_space<vmem>>, vector<1x1x256xf32>
      tpu.vector_store %arg6[%c0_22, %c0_23, %c0_24], %42 {strides = array<i32>} : memref<1x1x256xf32, #tpu.memory_space<vmem>>, vector<1x1x256xf32>,
    } else {
    }
    %c0 = arith.constant 0 : index
    %c0_1 = arith.constant 0 : index
    %c0_2 = arith.constant 0 : index
    %3 = vector.load %arg3[%c0, %c0_1, %c0_2] : memref<1x4x256xf32, #tpu.memory_space<vmem>>, vector<1x4x256xf32>
    %4 = vector.shape_cast %3 : vector<1x4x256xf32> to vector<4x256xf32>
    %c0_3 = arith.constant 0 : index
    %c0_4 = arith.constant 0 : index
    %c0_5 = arith.constant 0 : index
    %5 = vector.load %arg4[%c0_3, %c0_4, %c0_5] : memref<1x1x256xi32, #tpu.memory_space<vmem>>, vector<1x1x256xi32>
    %6 = vector.shape_cast %5 : vector<1x1x256xi32> to vector<1x256xi32>
    %cst = arith.constant dense<0xFF800000> : vector<256xf32>
    %7 = vector.multi_reduction <maximumf>, %4, %cst [0] : vector<4x256xf32> to vector<256xf32>
    %8 = vector.shape_cast %7 : vector<256xf32> to vector<1x256xf32>
    %9 = vector.broadcast %8 : vector<1x256xf32> to vector<4x256xf32>
    %10 = arith.subf %4, %9 : vector<4x256xf32>
    %11 = math.exp %10 : vector<4x256xf32>
    %12 = tpu.iota {dimensions = array<i32: 0>} : vector<4x256xi32>
    %13 = vector.broadcast %6 : vector<1x256xi32> to vector<4x256xi32>
    %14 = arith.cmpi eq, %12, %13 : vector<4x256xi32>
    %cst_6 = arith.constant dense<0.000000e+00> : vector<256xf32>
    %15 = vector.multi_reduction <add>, %11, %cst_6 [0] : vector<4x256xf32> to vector<256xf32>
    %16 = vector.shape_cast %15 : vector<256xf32> to vector<1x256xf32>
    %17 = math.log %16 : vector<1x256xf32>
    %cst_7 = arith.constant 0.000000e+00 : f32
    %18 = vector.broadcast %cst_7 : f32 to vector<4x256xf32>
    %19 = arith.select %14, %10, %18 : vector<4x256xi1>, vector<4x256xf32>
    %cst_8 = arith.constant dense<0.000000e+00> : vector<256xf32>
    %20 = vector.multi_reduction <add>, %19, %cst_8 [0] : vector<4x256xf32> to vector<256xf32>
    %21 = vector.shape_cast %20 : vector<256xf32> to vector<1x256xf32>
    %22 = arith.subf %21, %17 : vector<1x256xf32>
    %23 = math.exp %22 : vector<1x256xf32>
    %c0_9 = arith.constant 0 : index
    %c0_10 = arith.constant 0 : index
    %24 = vector.load %arg5[%c0_9, %c0_10] : memref<4x1xf32, #tpu.memory_space<vmem>>, vector<4x1xf32>
    %cst_11 = arith.constant 0.000000e+00 : f32
    %25 = vector.shape_cast %24 : vector<4x1xf32> to vector<4x1xf32>
    %26 = vector.broadcast %25 : vector<4x1xf32> to vector<4x256xf32>
    %27 = vector.broadcast %cst_11 : f32 to vector<4x256xf32>
    %28 = arith.select %14, %26, %27 : vector<4x256xi1>, vector<4x256xf32>
    %cst_12 = arith.constant dense<0.000000e+00> : vector<256xf32>
    %29 = vector.multi_reduction <add>, %28, %cst_12 [0] : vector<4x256xf32> to vector<256xf32>
    %30 = vector.shape_cast %29 : vector<256xf32> to vector<1x256xf32>
    %31 = arith.mulf %22, %30 : vector<1x256xf32>
    %cst_13 = arith.constant 1.000000e+00 : f32
    %32 = vector.broadcast %cst_13 : f32 to vector<1x256xf32>
    %33 = arith.subf %32, %23 : vector<1x256xf32>
    %34 = arith.mulf %33, %33 : vector<1x256xf32>
    %cst_14 = arith.constant 0.000000e+00 : f32
    %35 = vector.broadcast %cst_14 : f32 to vector<1x256xf32>
    %36 = arith.subf %35, %34 : vector<1x256xf32>
    %37 = arith.mulf %36, %31 : vector<1x256xf32>
    %c0_15 = arith.constant 0 : index
    %c0_16 = arith.constant 0 : index
    %c0_17 = arith.constant 0 : index
    %38 = vector.load %arg6[%c0_15, %c0_16, %c0_17] : memref<1x1x256xf32, #tpu.memory_space<vmem>>, vector<1x1x256xf32>
    %39 = vector.shape_cast %37 : vector<1x256xf32> to vector<1x1x256xf32>
    %40 = arith.addf %38, %39 : vector<1x1x256xf32>
    %c0_18 = arith.constant 0 : index
    %c0_19 = arith.constant 0 : index
    %c0_20 = arith.constant 0 : index
    %41 = vector.load %arg6[%c0_18, %c0_19, %c0_20] : memref<1x1x256xf32, #tpu.memory_space<vmem>>, vector<1x1x256xf32>
    tpu.vector_store %arg6[%c0_18, %c0_19, %c0_20], %40 {strides = array<i32>} : memref<1x1x256xf32, #tpu.memory_space<vmem>>, vector<1x1x256xf32>,
    return
  }
  func.func @transform_0(%arg0: i32, %arg1: i32, %arg2: i32) -> (i32, i32, i32) {
    %c1_i32 = arith.constant 1 : i32
    %0 = arith.muli %arg1, %c1_i32 : i32
    %1 = arith.addi %0, %arg2 : i32
    %c0_i32 = arith.constant 0 : i32
    %c0_i32_0 = arith.constant 0 : i32
    return %arg0, %c0_i32, %1 : i32, i32, i32
  }
  func.func @transform_1(%arg0: i32, %arg1: i32, %arg2: i32) -> (i32, i32, i32) {
    %c1_i32 = arith.constant 1 : i32
    %0 = arith.muli %arg1, %c1_i32 : i32
    %1 = arith.addi %0, %arg2 : i32
    %c0_i32 = arith.constant 0 : i32
    %c0_i32_0 = arith.constant 0 : i32
    return %arg0, %c0_i32, %1 : i32, i32, i32
  }
  func.func @transform_2(%arg0: i32, %arg1: i32, %arg2: i32) -> (i32, i32) {
    %c0_i32 = arith.constant 0 : i32
    %c0_i32_0 = arith.constant 0 : i32
    %c0_i32_1 = arith.constant 0 : i32
    return %c0_i32, %c0_i32_0 : i32, i32
  }
  func.func @transform_3(%arg0: i32, %arg1: i32, %arg2: i32) -> (i32, i32, i32) {
    %c1_i32 = arith.constant 1 : i32
    %0 = arith.muli %arg0, %c1_i32 : i32
    %1 = arith.addi %0, %arg1 : i32
    %c0_i32 = arith.constant 0 : i32
    %c0_i32_0 = arith.constant 0 : i32
    %c0_i32_1 = arith.constant 0 : i32
    return %1, %c0_i32, %c0_i32_0 : i32, i32, i32
  }
}

</mosaic_0001>

<llo_original>
// kernel: tpu_custom_call.1
$region0: #{tpu_custom_call.1}
  #allocation0 [shape = 'u32[]', space=smem, size = 0x4, offset = 0x4, fixed_abs, tag = 'smem constant byte address 0x4 - core index']
  #allocation1 [shape = 'u32[144,128]{1,0:T(1,128)}', space=vmem, size = 0x12000, scoped, tag = 'internal scratch']
  %s0 = inlined_call_operand.hbm [shape: f32[2,4,256], index: 0, kind: input, shape index: {}]
  %s1 = inlined_call_operand.vmem [shape: s32[2,1,256], index: 1, kind: input, shape index: {}]
  %s2 = inlined_call_operand.vmem [shape: f32[4,1], index: 2, kind: input, shape index: {}]
  %s3 = inlined_call_operand.hbm [shape: f32[2,1,256], index: 3, kind: output, shape index: {}]
  %s4 = sld [smem:[#allocation0]]
  $region53: #{tpu_custom_call.1} parent=0
    _
  %s6 = ssub.s32 1, %s4
  %s7 = scalar_select 0, %s6, %s4
  $region1: #{tpu_custom_call.1} parent=0
    #allocation2 [shape = 'u8[8192]{0}', space=vmem, size = 0x2000, scoped, tag = 'input window, operand 0']
    #allocation3 [shape = 's32[2]{0}', space=sflag, size = 0x8, scoped, tag = 'scoped memory for tpu_custom_call.1']
    #allocation4 [shape = 's32[2]{0}', space=sflag, size = 0x8, scoped, tag = 'scoped memory for tpu_custom_call.1']
    #allocation5 [shape = 'u8[2048]{0}', space=vmem, size = 0x800, scoped, tag = 'output window, operand 0']
    %8 = vsyncpa [#allocation3], 0
    %s9 = scalar_lea.sflag [#allocation3], 1
    %10 = vsyncpa %s9, 0
    %11 = vsyncpa [#allocation4], 0
    %s12 = scalar_lea.sflag [#allocation4], 1
    %13 = vsyncpa %s12, 0
    loop: start=0, step=1, limit=4
    $region2: #{tpu_custom_call.1} parent=1 // loop_pre_header
      _
    $region3: #{tpu_custom_call.1} parent=1 // loop_header
      %s15 = sphi 0, %s19
      %p16 = scmp.ge.s32.totalorder %s15, 4
      %s22 = sphi 0, %s41
      %s23 = sphi 0, %s37
      %s24 = sphi 0, %s33
      %s25 = sphi 0, %s22
      %s26 = sphi 0, %s23
      %s27 = sphi 0, %s24
      %s28 = sphi 0, %s25
      %s29 = sphi 0, %s26
      %s30 = sphi 0, %s27
      %s48 = sphi 0, %s50
      %s51 = sphi 0, %s48
      %s52 = sphi 0, %s51
      %s68 = sphi 0, %s52
      %s78 = sphi 0, %s80
      %s81 = sphi 0, %s78
      %s82 = sphi 0, %s81
      %s98 = sphi 0, %s82
      %s102 = sphi 0, %s102
      %s104 = sphi 0, %s102
      %s105 = sphi 0, %s104
      %s119 = sphi 0, %s105
      %s127 = sphi 0, %s129
      %s130 = sphi 0, %s127
      %s131 = sphi 0, %s130
      %s147 = sphi 0, %s131
    $region4: #{tpu_custom_call.1} parent=1 // loop_header_branch
      %18 = sbr.rel (%p16) target = $region8
    $region5: #{tpu_custom_call.1} parent=1 // loop_body
      %s20 = ssub.s32 %s15, 1
      %s21 = ssub.s32 %s15, 2
      %s31 = sadd.s32 1, %s24
      %p32 = scmp.ge.s32.totalorder %s31, 1
      %s33 = scalar_select %p32, 0, %s31
      %s34 = sadd.s32 1, %s23
      %s35 = scalar_select %p32, %s34, %s23
      %p36 = scmp.ge.s32.totalorder %s35, 1
      %s37 = scalar_select %p36, 0, %s35
      %s38 = sadd.s32 1, %s22
      %s39 = scalar_select %p36, %s38, %s22
      %p40 = scmp.ge.s32.totalorder %s39, 2
      %s41 = scalar_select %p40, 0, %s39
      %s42 = sadd.s32 %s23, %s24
      %s43 = sadd.s32 %s37, %s33
      %s44 = ssub.s32 %s22, %s41
      %s45 = ssub.s32 %s42, %s43
      %s46 = sor.u32 %s44, %s45
      %p47 = scmp.eq.s32.totalorder %s46, 0
      %s49 = sadd.s32 %s48, 1
      %s50 = scalar_select %p47, %s48, %s49
      %p53 = pneg %p47
      %p54 = scmp.eq.s32.totalorder %s15, 1
      %p55 = por %p53, %p54
      %p56 = scmp.ne.s32.totalorder %s48, %s51
      %p57 = scmp.eq.s32.totalorder %s15, 0
      %p58 = por %p56, %p57
      %p59 = scmp.ne.s32.totalorder %s48, %s51
      %p60 = scmp.eq.s32.totalorder %s20, 1
      %p61 = por %p59, %p60
      %p62 = scmp.ne.s32.totalorder %s51, %s52
      %p63 = scmp.eq.s32.totalorder %s20, 0
      %p64 = por %p62, %p63
      %p65 = scmp.ne.s32.totalorder %s51, %s52
      %p66 = scmp.eq.s32.totalorder %s21, 1
      %p67 = por %p65, %p66
      %p69 = scmp.ne.s32.totalorder %s52, %s68
      %p70 = scmp.eq.s32.totalorder %s21, 0
      %p71 = por %p69, %p70
      %s72 = sadd.s32 %s23, %s24
      %s73 = sadd.s32 %s37, %s33
      %s74 = ssub.s32 %s22, %s41
      %s75 = ssub.s32 %s72, %s73
      %s76 = sor.u32 %s74, %s75
      %p77 = scmp.eq.s32.totalorder %s76, 0
      %s79 = sadd.s32 %s78, 1
      %s80 = scalar_select %p77, %s78, %s79
      %p83 = pneg %p77
      %p84 = scmp.eq.s32.totalorder %s15, 1
      %p85 = por %p83, %p84
      %p86 = scmp.ne.s32.totalorder %s78, %s81
      %p87 = scmp.eq.s32.totalorder %s15, 0
      %p88 = por %p86, %p87
      %p89 = scmp.ne.s32.totalorder %s78, %s81
      %p90 = scmp.eq.s32.totalorder %s20, 1
      %p91 = por %p89, %p90
      %p92 = scmp.ne.s32.totalorder %s81, %s82
      %p93 = scmp.eq.s32.totalorder %s20, 0
      %p94 = por %p92, %p93
      %p95 = scmp.ne.s32.totalorder %s81, %s82
      %p96 = scmp.eq.s32.totalorder %s21, 1
      %p97 = por %p95, %p96
      %p99 = scmp.ne.s32.totalorder %s82, %s98
      %p100 = scmp.eq.s32.totalorder %s21, 0
      %p101 = por %p99, %p100
      %s103 = sadd.s32 %s102, 1
      %p106 = scmp.eq.s32.totalorder %s15, 1
      %p107 = scmp.ne.s32.totalorder %s102, %s104
      %p108 = scmp.eq.s32.totalorder %s15, 0
      %p109 = por %p107, %p108
      %p110 = scmp.ne.s32.totalorder %s102, %s104
      %p111 = scmp.eq.s32.totalorder %s20, 1
      %p112 = por %p110, %p111
      %p113 = scmp.ne.s32.totalorder %s104, %s105
      %p114 = scmp.eq.s32.totalorder %s20, 0
      %p115 = por %p113, %p114
      %p116 = scmp.ne.s32.totalorder %s104, %s105
      %p117 = scmp.eq.s32.totalorder %s21, 1
      %p118 = por %p116, %p117
      %p120 = scmp.ne.s32.totalorder %s105, %s119
      %p121 = scmp.eq.s32.totalorder %s21, 0
      %p122 = por %p120, %p121
      %s123 = sadd.s32 %s22, %s23
      %s124 = sadd.s32 %s41, %s37
      %s125 = ssub.s32 %s123, %s124
      %p126 = scmp.eq.s32.totalorder %s125, 0
      %s128 = sadd.s32 %s127, 1
      %s129 = scalar_select %p126, %s127, %s128
      %p132 = pneg %p126
      %p133 = scmp.eq.s32.totalorder %s15, 1
      %p134 = por %p132, %p133
      %p135 = scmp.ne.s32.totalorder %s127, %s130
      %p136 = scmp.eq.s32.totalorder %s15, 0
      %p137 = por %p135, %p136
      %p138 = scmp.ne.s32.totalorder %s127, %s130
      %p139 = scmp.eq.s32.totalorder %s20, 1
      %p140 = por %p138, %p139
      %p141 = scmp.ne.s32.totalorder %s130, %s131
      %p142 = scmp.eq.s32.totalorder %s20, 0
      %p143 = por %p141, %p142
      %p144 = scmp.ne.s32.totalorder %s130, %s131
      %p145 = scmp.eq.s32.totalorder %s21, 1
      %p146 = por %p144, %p145
      %p148 = scmp.ne.s32.totalorder %s131, %s147
      %p149 = scmp.eq.s32.totalorder %s21, 0
      %p150 = por %p148, %p149
      %p151 = scmp.le.s32.totalorder 1, %s15
      %p152 = scmp.lt.s32.totalorder %s15, 3
      %p153 = pnand %p151, %p152
      %p154 = pneg %p153
      // Predicated region
      $region9: #{tpu_custom_call.1} parent=5 // pred_check
        _
      $region10: #{tpu_custom_call.1} parent=5 // pred_check_branch
        %156 = sbr.rel (%p153) target = $region12
      $region11: #{tpu_custom_call.1} parent=5 // pred_region
        %s157 = ssub.s32 %s15, 1
        // Predicated region
        $region13: #{tpu_custom_call.1} parent=11 // pred_check
          %p158 = pneg %p115
        $region14: #{tpu_custom_call.1} parent=11 // pred_check_branch
          %160 = sbr.rel (%p158) target = $region16
        $region15: #{tpu_custom_call.1} parent=11 // pred_region
          _
        $region16: #{tpu_custom_call.1} parent=11 // pred_fallthru
          _
      $region12: #{tpu_custom_call.1} parent=5 // pred_fallthru
        _
      %p161 = scmp.lt.s32.totalorder %s15, 2
      // Predicated region
      $region17: #{tpu_custom_call.1} parent=5 // pred_check
        %p162 = pneg %p161
      $region18: #{tpu_custom_call.1} parent=5 // pred_check_branch
        %164 = sbr.rel (%p162) target = $region20
      $region19: #{tpu_custom_call.1} parent=5 // pred_region
        // Predicated region
        $region21: #{tpu_custom_call.1} parent=19 // pred_check
          %p165 = pneg %p58
        $region22: #{tpu_custom_call.1} parent=19 // pred_check_branch
          %167 = sbr.rel (%p165) target = $region24
        $region23: #{tpu_custom_call.1} parent=19 // pred_region
          %s168 = sand.u32 %s48, 1
          %s169 = scalar_lea.sflag [#allocation3], %s168
          %s170 = sand.u32 %s48, 1
          %s171 = smul.addr %s170, 8
          %s172 = scalar_lea.vmem [#allocation2], %s171
          %s173 = sadd.s32 %s23, %s24
          %s174 = smul.u32 2, %s173
          %s176 = ssub.s32 128, 128
          %177 = vsyncadd %s169, %s176
          %s178 = smul.addr %s22, 2
          %s179 = sadd.s32 %s174, %s178
          %s180 = smul.addr %s179, 64
          %s181 = scalar_lea.hbm %s0, %s180
          %s183 = sshll.u32 %s172, 4
          %s184 = int_to_ptr.vmem [resolvable:$true] %s183
          %186 = dma.hbm_to_vmem [thread:$0]  %s181, 128, %s184, %s169
        $region24: #{tpu_custom_call.1} parent=19 // pred_fallthru
          _
        // Predicated region
        $region25: #{tpu_custom_call.1} parent=19 // pred_check
          %p187 = pneg %p88
        $region26: #{tpu_custom_call.1} parent=19 // pred_check_branch
          %189 = sbr.rel (%p187) target = $region28
        $region27: #{tpu_custom_call.1} parent=19 // pred_region
          %s190 = sadd.s32 %s23, %s24
          %s191 = smul.u32 2, %s190
          %p192 = scmp.lt.s32.totalorder %s22, 1
          %s193 = scalar_select %p192, %s22, 1
          %p194 = scmp.lt.s32.totalorder %s191, 1
          %s195 = scalar_select %p194, %s191, 1
          %s196 = smul.addr %s193, 2
          %s197 = sadd.s32 %s195, %s196
          %s198 = scalar_lea.vmem %s1, %s197
          %s199 = sadd.s32 %s23, %s24
          %s200 = smul.u32 2, %s199
        $region28: #{tpu_custom_call.1} parent=19 // pred_fallthru
          _
      $region20: #{tpu_custom_call.1} parent=5 // pred_fallthru
        _
      %p201 = scmp.le.s32.totalorder 1, %s15
      %p202 = scmp.lt.s32.totalorder %s15, 3
      %p203 = pnand %p201, %p202
      %p204 = pneg %p203
      // Predicated region
      $region29: #{tpu_custom_call.1} parent=5 // pred_check
        _
      $region30: #{tpu_custom_call.1} parent=5 // pred_check_branch
        %206 = sbr.rel (%p203) target = $region32
      $region31: #{tpu_custom_call.1} parent=5 // pred_region
        %s207 = ssub.s32 %s15, 1
        %s208 = sand.u32 %s51, 1
        %s209 = scalar_lea.sflag [#allocation3], %s208
        %s210 = sand.u32 %s51, 1
        %s211 = smul.addr %s210, 8
        %s212 = scalar_lea.vmem [#allocation2], %s211
        // Predicated region
        $region33: #{tpu_custom_call.1} parent=31 // pred_check
          %p213 = pneg %p64
        $region34: #{tpu_custom_call.1} parent=31 // pred_check_branch
          %215 = sbr.rel (%p213) target = $region36
        $region35: #{tpu_custom_call.1} parent=31 // pred_region
          %216 = dma.done %s209, 128
        $region36: #{tpu_custom_call.1} parent=31 // pred_fallthru
          _
        %s217 = sand.u32 %s51, 1
        %s218 = scalar_lea.sflag [#allocation3], %s217
        %s219 = sand.u32 %s51, 1
        %s220 = smul.addr %s219, 8
        %s221 = scalar_lea.vmem [#allocation2], %s220
        %p222 = pneg %p64
        %p223 = pneg %p61
        %s224 = sadd.s32 %s26, %s27
        %s225 = smul.u32 2, %s224
        %p226 = scmp.lt.s32.totalorder %s25, 1
        %s227 = scalar_select %p226, %s25, 1
        %p228 = scmp.lt.s32.totalorder %s225, 1
        %s229 = scalar_select %p228, %s225, 1
        %s230 = smul.addr %s227, 2
        %s231 = sadd.s32 %s229, %s230
        %s232 = scalar_lea.vmem %s1, %s231
        %p233 = pneg %p94
        %p234 = pneg %p91
        %p235 = pneg %p115
        %p236 = pneg %p112
        %p237 = pneg %p143
        %p238 = pneg %p140
        %s239 = sand.u32 %s130, 1
        %s240 = scalar_lea.sflag [#allocation4], %s239
        %s241 = sand.u32 %s130, 1
        %s242 = smul.addr %s241, 2
        %s243 = scalar_lea.vmem [#allocation5], %s242
        %s244 = sadd.s32 %s26, %s27
        %s245 = smul.u32 2, %s244
        %s246 = sadd.s32 %s26, %s27
        %s247 = smul.u32 2, %s246
        %p248 = scmp.lt.s32.totalorder %s25, 1
        %s249 = scalar_select %p248, %s25, 1
        %p250 = scmp.lt.s32.totalorder %s247, 1
        %s251 = scalar_select %p250, %s247, 1
        %s252 = smul.addr %s249, 2
        %s253 = sadd.s32 %s251, %s252
        %s254 = scalar_lea.vmem %s1, %s253
        %s255 = sadd.s32 %s26, %s27
        %s256 = smul.u32 2, %s255
        %s257 = sadd.s32 %s25, %s26
        %p258 = scmp.eq.s32.totalorder %s27, 0
        // Predicated region
        $region37: #{tpu_custom_call.1} parent=31 // pred_check
          %p259 = pneg %p258
        $region38: #{tpu_custom_call.1} parent=31 // pred_check_branch
          %261 = sbr.rel (%p259) target = $region40
        $region39: #{tpu_custom_call.1} parent=31 // pred_region
          %v262 = vlaneseq
          %vm263 = vcmp.ge.s32.totalorder %v262, 0
          %vm264 = vcmp.lt.s32.totalorder %v262, 256
          %vm265 = vmand %vm263, %vm264
          %266 = vst.msk [vmem:[%s243] sm:$0x3] %vm265, 0.0
        $region40: #{tpu_custom_call.1} parent=31 // pred_fallthru
          _
        %v267 = vld [vmem:[%s212] sm:$0xff]
        %v268 = vld [vmem:[%s254] sm:$0x3]
        %v270 = vcombine.high %v267, %v267
        %vm272 = vcmask 1043456
        %v273 = vsel %vm272, %v267, -inf
        %v274 = vrot.slane %v273, 4
        %v275 = vmax.f32 %v273, %v274
        %v276 = vrot.slane %v275, 2
        %v277 = vmax.f32 %v275, %v276
        %v278 = vrot.slane %v277, 1
        %v279 = vmax.f32 %v277, %v278
        %v280 = vsel %vm272, %v270, -inf
        %v281 = vrot.slane %v280, 4
        %v282 = vmax.f32 %v280, %v281
        %v283 = vrot.slane %v282, 2
        %v284 = vmax.f32 %v282, %v283
        %v285 = vrot.slane %v284, 1
        %v286 = vmax.f32 %v284, %v285
        %v289 = vcombine.low %v279, %v286
        %v291 = vsub.f32 %v267, %v289
        %v292 = vmul.f32 %v291, 1.442695
        %v293 = vpow.pop %v292
        %v294 = vlaneseq
        %v295 = vshrl.u32 %v294, 7
        %v296 = vlaneseq
        %v297 = vshrl.u32 %v296, 7
        %v298 = vsub.s32 0, %v297
        %v299 = vrot.slane %v268, %v298
        %v300 = vlaneseq
        %v301 = vshrl.u32 %v300, 7
        %v302 = vsub.s32 1, %v301
        %v303 = vrot.slane %v268, %v302
        %vm304 = vcmp.eq.s32.totalorder %v295, %v299
        %vm305 = vcmp.eq.s32.totalorder %v295, %v303
        %v307 = vcombine.high %v293, %v293
        %v309 = vsel %vm272, %v293, 0.0
        %v310 = vrot.slane %v309, 4
        %v311 = vadd.f32 %v309, %v310
        %v312 = vrot.slane %v311, 2
        %v313 = vadd.f32 %v311, %v312
        %v314 = vrot.slane %v313, 1
        %v315 = vadd.f32 %v313, %v314
        %v316 = vsel %vm272, %v307, 0.0
        %v317 = vrot.slane %v316, 4
        %v318 = vadd.f32 %v316, %v317
        %v319 = vrot.slane %v318, 2
        %v320 = vadd.f32 %v318, %v319
        %v321 = vrot.slane %v320, 1
        %v322 = vadd.f32 %v320, %v321
        %v323 = vlog2.pop %v315
        %v324 = vmul.f32 %v323, 0.6931472
        %v325 = vlog2.pop %v322
        %v326 = vmul.f32 %v325, 0.6931472
        %v328 = vcombine.high %v291, %v291
        %v330 = vsel %vm304, %v291, 0.0
        %v331 = vsel %vm305, %v328, 0.0
        %v332 = vsel %vm272, %v330, 0.0
        %v333 = vrot.slane %v332, 4
        %v334 = vadd.f32 %v332, %v333
        %v335 = vrot.slane %v334, 2
        %v336 = vadd.f32 %v334, %v335
        %v337 = vrot.slane %v336, 1
        %v338 = vadd.f32 %v336, %v337
        %v339 = vsel %vm272, %v331, 0.0
        %v340 = vrot.slane %v339, 4
        %v341 = vadd.f32 %v339, %v340
        %v342 = vrot.slane %v341, 2
        %v343 = vadd.f32 %v341, %v342
        %v344 = vrot.slane %v343, 1
        %v345 = vadd.f32 %v343, %v344
        %v346 = vsub.f32 %v338, %v324
        %v347 = vsub.f32 %v345, %v326
        %v348 = vmul.f32 %v346, 1.442695
        %v349 = vpow.pop %v348
        %v350 = vmul.f32 %v347, 1.442695
        %v351 = vpow.pop %v350
        %v352 = vld [vmem:[%s2] sm:$0xf]
        %354 = vset.pattern.permute.xlu0 0
        %355 = vperm.xlu0 %354, %v352
        %v356 = vpop.permute.xlu0 %355
        %v358 = vsel %vm304, %v356, 0.0
        %v359 = vsel %vm305, %v356, 0.0
        %v360 = vsel %vm272, %v358, 0.0
        %v361 = vrot.slane %v360, 4
        %v362 = vadd.f32 %v360, %v361
        %v363 = vrot.slane %v362, 2
        %v364 = vadd.f32 %v362, %v363
        %v365 = vrot.slane %v364, 1
        %v366 = vadd.f32 %v364, %v365
        %v367 = vsel %vm272, %v359, 0.0
        %v368 = vrot.slane %v367, 4
        %v369 = vadd.f32 %v367, %v368
        %v370 = vrot.slane %v369, 2
        %v371 = vadd.f32 %v369, %v370
        %v372 = vrot.slane %v371, 1
        %v373 = vadd.f32 %v371, %v372
        %v374 = vmul.f32 %v346, %v366
        %v375 = vmul.f32 %v347, %v373
        %v376 = vsub.f32 1.0, %v349
        %v377 = vsub.f32 1.0, %v351
        %v378 = vmul.f32 %v376, %v376
        %v379 = vmul.f32 %v377, %v377
        %v380 = vsub.f32 0.0, %v378
        %v381 = vsub.f32 0.0, %v379
        %v382 = vmul.f32 %v380, %v374
        %v383 = vmul.f32 %v381, %v375
        %v384 = vld [vmem:[%s243] sm:$0x3]
        %v387 = vcombine.low %v382, %v383
        %v389 = vunpack.c.l.s4 1966171168
        %v390 = vunpack.c.0.s8 %v389
        %v391 = vlaneseq
        %v392 = vshrl.u32 %v391, 7
        %v393 = vsub.s32 %v390, %v392
        %v394 = vrot.slane %v387, %v393
        %v396 = vunpack.c.l.s4 1966171168
        %v397 = vunpack.c.0.s8 %v396
        %v398 = vlaneseq
        %v399 = vshrl.u32 %v398, 7
        %v400 = vsub.s32 %v397, %v399
        %v401 = vrot.slane %v394, %v400
        %v403 = vadd.f32 %v384, %v401
        %v404 = vlaneseq
        %vm405 = vcmp.ge.s32.totalorder %v404, 0
        %vm406 = vcmp.lt.s32.totalorder %v404, 256
        %vm407 = vmand %vm405, %vm406
        %408 = vst.msk [vmem:[%s243] sm:$0x3] %vm407, %v403
        %s409 = sand.u32 %s130, 1
        %s410 = scalar_lea.sflag [#allocation4], %s409
        %s411 = sand.u32 %s130, 1
        %s412 = smul.addr %s411, 2
        %s413 = scalar_lea.vmem [#allocation5], %s412
        // Predicated region
        $region41: #{tpu_custom_call.1} parent=31 // pred_check
          %p414 = pneg %p140
        $region42: #{tpu_custom_call.1} parent=31 // pred_check_branch
          %416 = sbr.rel (%p414) target = $region44
        $region43: #{tpu_custom_call.1} parent=31 // pred_region
          %s417 = sadd.s32 %s25, %s26
          %s419 = ssub.s32 32, 32
          %420 = vsyncadd %s410, %s419
          %s421 = smul.addr %s417, 2
          %s422 = smul.addr %s421, 16
          %s423 = scalar_lea.hbm %s3, %s422
          %s425 = sshll.u32 %s413, 4
          %s426 = int_to_ptr.vmem [resolvable:$true] %s425
          %428 = dma.vmem_to_hbm [thread:$0]  %s426, 32, %s423, %s410
        $region44: #{tpu_custom_call.1} parent=31 // pred_fallthru
          _
      $region32: #{tpu_custom_call.1} parent=5 // pred_fallthru
        _
      %p429 = scmp.le.s32.totalorder 2, %s15
      // Predicated region
      $region45: #{tpu_custom_call.1} parent=5 // pred_check
        %p430 = pneg %p429
      $region46: #{tpu_custom_call.1} parent=5 // pred_check_branch
        %432 = sbr.rel (%p430) target = $region48
      $region47: #{tpu_custom_call.1} parent=5 // pred_region
        %s433 = ssub.s32 %s15, 2
        // Predicated region
        $region49: #{tpu_custom_call.1} parent=47 // pred_check
          %p434 = pneg %p146
        $region50: #{tpu_custom_call.1} parent=47 // pred_check_branch
          %436 = sbr.rel (%p434) target = $region52
        $region51: #{tpu_custom_call.1} parent=47 // pred_region
          %s437 = sand.u32 %s131, 1
          %s438 = scalar_lea.sflag [#allocation4], %s437
          %s439 = sand.u32 %s131, 1
          %s440 = smul.addr %s439, 2
          %s441 = scalar_lea.vmem [#allocation5], %s440
          %442 = dma.done %s438, 32
        $region52: #{tpu_custom_call.1} parent=47 // pred_fallthru
          _
      $region48: #{tpu_custom_call.1} parent=5 // pred_fallthru
        _
    $region6: #{tpu_custom_call.1} parent=1 // loop_footer
      %s19 = sadd.s32 1, %s15
    $region7: #{tpu_custom_call.1} parent=1 // loop_footer_branch
      %14 = sbr.rel target = $region3
    $region8: #{tpu_custom_call.1} parent=1 // loop_exit
      _
    %443 = vsyncpa [#allocation3], 1
    %s444 = scalar_lea.sflag [#allocation3], 1
    %445 = vsyncpa %s444, 1
    %446 = vsyncpa [#allocation4], 1
    %s447 = scalar_lea.sflag [#allocation4], 1
    %448 = vsyncpa %s447, 1

</llo_original>
